<compile_context>
chip_gen: v7x
topology: tpu7x:2x2x1
jax: 0.10.0
libtpu: 0.0.40
codegen_flags: <defaults>
</compile_context>

<pallas_src>
import numpy as np

import jax
import jax.numpy as jnp
from jax.experimental import pallas as pl
from jax.experimental.pallas import tpu as pltpu


_HIDDEN = 768
_FC1 = 32
_HEAD_DIMS = (4, 3, 3, 2)                       # type / polarity / tense / certainty
_HEAD_OFFS = (0, 4, 7, 10)
_NUM_LOGITS = sum(_HEAD_DIMS)                   # 12
_OUT_W = 16                                     # narrow lane-padded logit/output slab


# ----------------------------------------------------------------------------
# Pallas kernel: fc1 + ReLU + fused head matmul + single-exp segmented softmax
# ----------------------------------------------------------------------------
def _classifier_kernel(x_ref, w1_ref, b1_ref, wh_ref, bh_ref, seg_ref, out_ref):
    x = x_ref[...]                                                   # (TB, 768)

    # fc1 + ReLU (fp32 accumulation on the MXU even when x/w1 are bf16).
    h = jnp.dot(x, w1_ref[...], preferred_element_type=jnp.float32) + b1_ref[...]
    h = jnp.maximum(h, 0.0)                                          # (TB, 32) fp32

    # One fused head matmul against the (32, 16) lane-padded weight slab.
    logits = jnp.dot(h, wh_ref[...], preferred_element_type=jnp.float32) + bh_ref[...]
    # (TB, 16); lanes >= 12 are exactly zero (zero-padded weights / bias).

    # Per-head maxes scattered into ONE per-lane max vector.  Head masks come
    # from a (1, 16) iota (broadcast; never materialized at (TB, 16)).
    lane = jax.lax.broadcasted_iota(jnp.int32, (1, _OUT_W), 1)       # (1, 16)
    mvec = None
    for off, dim in zip(_HEAD_OFFS, _HEAD_DIMS):
        maskh = (lane >= off) & (lane < off + dim)                   # (1, 16) bool
        m_h = jnp.max(jnp.where(maskh, logits, -jnp.inf), axis=1, keepdims=True)
        term = maskh.astype(jnp.float32) * m_h                       # (TB, 16)
        mvec = term if mvec is None else mvec + term
    # Pad lanes: mvec == 0 and logits == 0  ->  exp gives 1 (finite, harmless).

    # ONE exp pass over the whole slab (EUP), then the segmented (per-head)
    # denominators on the otherwise-idle MXU via the head-indicator matrix.
    e = jnp.exp(logits - mvec)                                       # (TB, 16)
    denom = jnp.dot(e, seg_ref[...], preferred_element_type=jnp.float32)
    # seg carries a diagonal 1 on pad lanes, so denom >= 1 everywhere (no inf/NaN).

    r = pl.reciprocal(denom, approx=True)                            # EUP approx
    r = r * (2.0 - denom * r)                                        # 1 Newton step -> ~fp32
    out_ref[...] = e * r                                             # single narrow store


# ----------------------------------------------------------------------------
# Wrapper: fuse head params, balanced batch tiling, parallel batch grid
# ----------------------------------------------------------------------------
def _round_up(x, m):
    return ((x + m - 1) // m) * m


def classifier_heads(klue_out, params, *, tile_b=4096, matmul_dtype=jnp.bfloat16):
    """softmax(type/polarity/tense/certainty heads) of the classifier, via Pallas."""
    B, H = klue_out.shape
    assert H == _HIDDEN

    # Fuse the four heads into one (32, 12) weight / (1, 12) bias, pad to 16 lanes.
    wh = jnp.concatenate([params["wt"], params["wp"], params["wn"], params["wc"]], axis=1)
    bh = jnp.concatenate([params["bt"], params["bp"], params["bn"], params["bc"]], axis=1)
    wh = jnp.pad(wh, ((0, 0), (0, _OUT_W - _NUM_LOGITS)))            # (32, 16)
    bh = jnp.pad(bh, ((0, 0), (0, _OUT_W - _NUM_LOGITS)))            # (1, 16)

    # Head-indicator matrix for the MXU segmented-sum: seg[i, j] = 1 iff lanes
    # i and j belong to the same head; pad lanes get a diagonal 1 so their
    # denominator is exactly 1 (keeps the kernel free of inf/NaN).
    seg_np = np.zeros((_OUT_W, _OUT_W), np.float32)
    for off, dim in zip(_HEAD_OFFS, _HEAD_DIMS):
        seg_np[off:off + dim, off:off + dim] = 1.0
    for i in range(_NUM_LOGITS, _OUT_W):
        seg_np[i, i] = 1.0
    seg = jnp.asarray(seg_np)

    # Balanced batch tiling: minimizes padding waste (<8 rows per tile) and
    # guarantees >= 2 grid steps for non-trivial batches so both v7x
    # TensorCores get work ("parallel" is a no-op on single-TC v5e/v6e).
    num_tiles = pl.cdiv(B, tile_b)
    if num_tiles == 1 and B > 8:
        num_tiles = 2
    tile = _round_up(pl.cdiv(B, num_tiles), 8)
    b_pad = num_tiles * tile

    # Cast BEFORE padding (half the copy bytes at bf16); pad only when needed.
    # TODO(synk): handle the ragged last batch tile in-kernel to avoid the padded copy.
    x = klue_out.astype(matmul_dtype)
    if b_pad != B:
        x = jnp.pad(x, ((0, b_pad - B), (0, 0)))
    w1 = params["w1"].astype(matmul_dtype)
    b1 = params["b1"]                                                # fp32

    # Explicit scoped-VMEM budget (defaults: 16 MiB v5e / 32 MiB v6e+v7x).
    itemsize = jnp.dtype(matmul_dtype).itemsize
    vmem_bytes = (2 * tile * _HIDDEN * itemsize                      # x, double-buffered
                  + 2 * tile * _OUT_W * 4                            # out, double-buffered
                  + 4 * (_HIDDEN * _FC1 * itemsize + _FC1 * _OUT_W * 4
                         + _OUT_W * _OUT_W * 4 + (_FC1 + _OUT_W) * 4))
    vmem_limit = int(min(max(vmem_bytes + (8 << 20), 32 << 20), 56 << 20))

    out = pl.pallas_call(
        _classifier_kernel,
        out_shape=jax.ShapeDtypeStruct((b_pad, _OUT_W), jnp.float32),
        grid=(num_tiles,),
        in_specs=[
            pl.BlockSpec((tile, _HIDDEN), lambda i: (i, 0)),         # activations: tiled
            pl.BlockSpec((_HIDDEN, _FC1), lambda i: (0, 0)),         # w1: resident
            pl.BlockSpec((1, _FC1), lambda i: (0, 0)),               # b1
            pl.BlockSpec((_FC1, _OUT_W), lambda i: (0, 0)),          # fused head weights
            pl.BlockSpec((1, _OUT_W), lambda i: (0, 0)),             # fused head bias
            pl.BlockSpec((_OUT_W, _OUT_W), lambda i: (0, 0)),        # head-indicator matrix
        ],
        out_specs=pl.BlockSpec((tile, _OUT_W), lambda i: (i, 0)),
        compiler_params=pltpu.CompilerParams(
            dimension_semantics=("parallel",),                       # v7x: 2 TCs split batch
            vmem_limit_bytes=vmem_limit,
        ),
    )(x, w1, b1, wh, bh, seg)

    # One narrow post-kernel slice; per-head views come from the tiny (B, 12) slab.
    out12 = out[:B, :_NUM_LOGITS]
    return tuple(out12[:, off:off + dim] for off, dim in zip(_HEAD_OFFS, _HEAD_DIMS))


# ----------------------------------------------------------------------------
# Deterministic parameter init (shapes from SentenceClassifier.__init__)
# ----------------------------------------------------------------------------
def init_params(key):
    keys = jax.random.split(key, 10)

    def linear(kw, kb, fan_in, fan_out):
        bound = 1.0 / jnp.sqrt(fan_in)
        w = jax.random.uniform(kw, (fan_in, fan_out), jnp.float32, -bound, bound)
        b = jax.random.uniform(kb, (1, fan_out), jnp.float32, -bound, bound)
        return w, b

    w1, b1 = linear(keys[0], keys[1], _HIDDEN, _FC1)  # fc1
    wt, bt = linear(keys[2], keys[3], _FC1, 4)        # type_clf
    wp, bp = linear(keys[4], keys[5], _FC1, 3)        # polarity_clf
    wn, bn = linear(keys[6], keys[7], _FC1, 3)        # tense_clf
    wc, bc = linear(keys[8], keys[9], _FC1, 2)        # certainty_clf
    return dict(w1=w1, b1=b1, wt=wt, bt=bt, wp=wp, bp=bp, wn=wn, bn=bn, wc=wc, bc=bc)


# ----------------------------------------------------------------------------
# Stand-in "klue" backbone (plain-JAX glue).
# TODO(synk): the real klue/roberta-small transformer encoder is an external
# pretrained AutoModel; here it is replaced by a deterministic embedding lookup
# with masked mean pooling producing the [:, 0] CLS-style (B, 768) vector.
# ----------------------------------------------------------------------------
def stand_in_backbone(key, input_ids, attention_mask, vocab_size=128, hidden=_HIDDEN):
    emb = jax.random.normal(key, (vocab_size, hidden), jnp.float32) * 0.02
    tok = emb[input_ids]                                        # (B, S, 768)
    mask = attention_mask[..., None].astype(jnp.float32)        # (B, S, 1)
    pooled = (tok * mask).sum(axis=1) / jnp.maximum(mask.sum(axis=1), 1.0)
    cls = jnp.tanh(tok[:, 0] + pooled)                          # (B, 768)
    return cls


# ----------------------------------------------------------------------------
# Reference (pure JAX) for a sanity check
# ----------------------------------------------------------------------------
def reference_forward(klue_out, p):
    h = jnp.maximum(klue_out @ p["w1"] + p["b1"], 0.0)

    def head(w, b):
        return jax.nn.softmax(h @ w + b, axis=1)

    return (head(p["wt"], p["bt"]), head(p["wp"], p["bp"]),
            head(p["wn"], p["bn"]), head(p["wc"], p["bc"]))


if __name__ == "__main__":
    key = jax.random.PRNGKey(0)
    k_emb, k_params, k_ids = jax.random.split(key, 3)

    B, S = 2, 8
    input_ids = jax.random.randint(k_ids, (B, S), 0, 128, dtype=jnp.int32)
    attention_mask = jnp.ones((B, S), dtype=jnp.int32).at[1, 6:].set(0)

    params = init_params(k_params)
    klue_out = stand_in_backbone(k_emb, input_ids, attention_mask)
    refs = reference_forward(klue_out, params)

    # fp32-operand path: matches the PyTorch module to 1e-5.
    outs_f32 = jax.block_until_ready(
        classifier_heads(klue_out, params, matmul_dtype=jnp.float32))
    for o, r in zip(outs_f32, refs):
        assert o.shape == r.shape and o.dtype == jnp.float32
        assert jnp.max(jnp.abs(o - r)) < 1e-5
        assert jnp.max(jnp.abs(jnp.sum(o, axis=1) - 1.0)) < 1e-5

    # Default bf16 matmul-operand path (halves the dominant activation HBM traffic);
    # looser tolerance because the fc1 operands are rounded to bf16.
    outs = jax.block_until_ready(classifier_heads(klue_out, params))
    for o, r in zip(outs, refs):
        assert o.shape == r.shape and o.dtype == jnp.float32
        assert jnp.max(jnp.abs(o - r)) < 5e-2
        assert jnp.max(jnp.abs(jnp.sum(o, axis=1) - 1.0)) < 1e-4

    # Multi-tile / ragged-batch path (grid > 1, balanced tiles, batch padding).
    B2 = 20
    klue_out2 = jnp.tile(klue_out, (B2 // B, 1))
    refs2 = reference_forward(klue_out2, params)
    outs2 = jax.block_until_ready(
        classifier_heads(klue_out2, params, tile_b=8, matmul_dtype=jnp.float32))
    for o, r in zip(outs2, refs2):
        assert o.shape == r.shape
        assert jnp.max(jnp.abs(o - r)) < 1e-5
        assert jnp.max(jnp.abs(jnp.sum(o, axis=1) - 1.0)) < 1e-5

    print("KERNEL_OK")
</pallas_src>

<mosaic_0001>
module attributes {stable_mosaic.version = 11 : i64} {
  func.func @_classifier_kernel(%arg0: i32, %arg1: memref<8x768xf32, #tpu.memory_space<vmem>>, %arg2: memref<768x32xf32, #tpu.memory_space<vmem>>, %arg3: memref<1x32xf32, #tpu.memory_space<vmem>>, %arg4: memref<32x16xf32, #tpu.memory_space<vmem>>, %arg5: memref<1x16xf32, #tpu.memory_space<vmem>>, %arg6: memref<16x16xf32, #tpu.memory_space<vmem>>, %arg7: memref<8x16xf32, #tpu.memory_space<vmem>>) attributes {dimension_semantics = [#tpu.dimension_semantics<parallel>], iteration_bounds = array<i64: 1>, scalar_prefetch = 0 : i64, scratch_operands = 0 : i64, tpu.core_type = #tpu.core_type<tc>, window_params = [{transform_indices = @transform_0, window_bounds = array<i64: 8, 768>}, {pipeline_mode = #tpu.pipeline_mode<synchronous>, transform_indices = @transform_1, window_bounds = array<i64: 768, 32>}, {pipeline_mode = #tpu.pipeline_mode<synchronous>, transform_indices = @transform_2, window_bounds = array<i64: 1, 32>}, {pipeline_mode = #tpu.pipeline_mode<synchronous>, transform_indices = @transform_3, window_bounds = array<i64: 32, 16>}, {pipeline_mode = #tpu.pipeline_mode<synchronous>, transform_indices = @transform_4, window_bounds = array<i64: 1, 16>}, {pipeline_mode = #tpu.pipeline_mode<synchronous>, transform_indices = @transform_5, window_bounds = array<i64: 16, 16>}, {transform_indices = @transform_6, window_bounds = array<i64: 8, 16>}]} {
    %c0 = arith.constant 0 : index
    %c0_0 = arith.constant 0 : index
    %0 = vector.load %arg1[%c0, %c0_0] : memref<8x768xf32, #tpu.memory_space<vmem>>, vector<8x768xf32>
    %c0_1 = arith.constant 0 : index
    %c0_2 = arith.constant 0 : index
    %1 = vector.load %arg2[%c0_1, %c0_2] : memref<768x32xf32, #tpu.memory_space<vmem>>, vector<768x32xf32>
    %cst = arith.constant dense<0.000000e+00> : vector<8x32xf32>
    %2 = tpu.matmul %0, %1, %cst {dimension_numbers = #tpu.dot_dimension_numbers<[1], [0], [0], [1], [0, 0, 1, 1], [], []>} : vector<8x768xf32>, vector<768x32xf32>, vector<8x32xf32> -> vector<8x32xf32>
    %c0_3 = arith.constant 0 : index
    %c0_4 = arith.constant 0 : index
    %3 = vector.load %arg3[%c0_3, %c0_4] : memref<1x32xf32, #tpu.memory_space<vmem>>, vector<1x32xf32>
    %4 = vector.broadcast %3 : vector<1x32xf32> to vector<8x32xf32>
    %5 = arith.addf %2, %4 : vector<8x32xf32>
    %cst_5 = arith.constant 0.000000e+00 : f32
    %6 = vector.broadcast %cst_5 : f32 to vector<8x32xf32>
    %7 = arith.maximumf %5, %6 : vector<8x32xf32>
    %c0_6 = arith.constant 0 : index
    %c0_7 = arith.constant 0 : index
    %8 = vector.load %arg4[%c0_6, %c0_7] : memref<32x16xf32, #tpu.memory_space<vmem>>, vector<32x16xf32>
    %cst_8 = arith.constant dense<0.000000e+00> : vector<8x16xf32>
    %9 = tpu.matmul %7, %8, %cst_8 {dimension_numbers = #tpu.dot_dimension_numbers<[1], [0], [0], [1], [0, 0, 1, 1], [], []>} : vector<8x32xf32>, vector<32x16xf32>, vector<8x16xf32> -> vector<8x16xf32>
    %c0_9 = arith.constant 0 : index
    %c0_10 = arith.constant 0 : index
    %10 = vector.load %arg5[%c0_9, %c0_10] : memref<1x16xf32, #tpu.memory_space<vmem>>, vector<1x16xf32>
    %11 = vector.broadcast %10 : vector<1x16xf32> to vector<8x16xf32>
    %12 = arith.addf %9, %11 : vector<8x16xf32>
    %13 = tpu.iota {dimensions = array<i32: 1>} : vector<1x16xi32>
    %c0_i32 = arith.constant 0 : i32
    %14 = vector.broadcast %c0_i32 : i32 to vector<1x16xi32>
    %15 = arith.cmpi sge, %13, %14 : vector<1x16xi32>
    %c4_i32 = arith.constant 4 : i32
    %16 = vector.broadcast %c4_i32 : i32 to vector<1x16xi32>
    %17 = arith.cmpi slt, %13, %16 : vector<1x16xi32>
    %18 = arith.andi %15, %17 : vector<1x16xi1>
    %cst_11 = arith.constant 0xFF800000 : f32
    %19 = vector.shape_cast %18 : vector<1x16xi1> to vector<1x16xi1>
    %20 = vector.broadcast %19 : vector<1x16xi1> to vector<8x16xi1>
    %21 = vector.broadcast %cst_11 : f32 to vector<8x16xf32>
    %22 = arith.select %20, %12, %21 : vector<8x16xi1>, vector<8x16xf32>
    %cst_12 = arith.constant dense<0xFF800000> : vector<8xf32>
    %23 = vector.multi_reduction <maximumf>, %22, %cst_12 [1] : vector<8x16xf32> to vector<8xf32>
    %24 = vector.shape_cast %23 : vector<8xf32> to vector<8x1xf32>
    %25 = arith.extui %18 : vector<1x16xi1> to vector<1x16xi32>
    %26 = arith.sitofp %25 : vector<1x16xi32> to vector<1x16xf32>
    %27 = vector.broadcast %26 : vector<1x16xf32> to vector<8x16xf32>
    %28 = vector.broadcast %24 : vector<8x1xf32> to vector<8x16xf32>
    %29 = arith.mulf %27, %28 : vector<8x16xf32>
    %c4_i32_13 = arith.constant 4 : i32
    %30 = vector.broadcast %c4_i32_13 : i32 to vector<1x16xi32>
    %31 = arith.cmpi sge, %13, %30 : vector<1x16xi32>
    %c7_i32 = arith.constant 7 : i32
    %32 = vector.broadcast %c7_i32 : i32 to vector<1x16xi32>
    %33 = arith.cmpi slt, %13, %32 : vector<1x16xi32>
    %34 = arith.andi %31, %33 : vector<1x16xi1>
    %cst_14 = arith.constant 0xFF800000 : f32
    %35 = vector.shape_cast %34 : vector<1x16xi1> to vector<1x16xi1>
    %36 = vector.broadcast %35 : vector<1x16xi1> to vector<8x16xi1>
    %37 = vector.broadcast %cst_14 : f32 to vector<8x16xf32>
    %38 = arith.select %36, %12, %37 : vector<8x16xi1>, vector<8x16xf32>
    %cst_15 = arith.constant dense<0xFF800000> : vector<8xf32>
    %39 = vector.multi_reduction <maximumf>, %38, %cst_15 [1] : vector<8x16xf32> to vector<8xf32>
    %40 = vector.shape_cast %39 : vector<8xf32> to vector<8x1xf32>
    %41 = arith.extui %34 : vector<1x16xi1> to vector<1x16xi32>
    %42 = arith.sitofp %41 : vector<1x16xi32> to vector<1x16xf32>
    %43 = vector.broadcast %42 : vector<1x16xf32> to vector<8x16xf32>
    %44 = vector.broadcast %40 : vector<8x1xf32> to vector<8x16xf32>
    %45 = arith.mulf %43, %44 : vector<8x16xf32>
    %46 = arith.addf %29, %45 : vector<8x16xf32>
    %c7_i32_16 = arith.constant 7 : i32
    %47 = vector.broadcast %c7_i32_16 : i32 to vector<1x16xi32>
    %48 = arith.cmpi sge, %13, %47 : vector<1x16xi32>
    %c10_i32 = arith.constant 10 : i32
    %49 = vector.broadcast %c10_i32 : i32 to vector<1x16xi32>
    %50 = arith.cmpi slt, %13, %49 : vector<1x16xi32>
    %51 = arith.andi %48, %50 : vector<1x16xi1>
    %cst_17 = arith.constant 0xFF800000 : f32
    %52 = vector.shape_cast %51 : vector<1x16xi1> to vector<1x16xi1>
    %53 = vector.broadcast %52 : vector<1x16xi1> to vector<8x16xi1>
    %54 = vector.broadcast %cst_17 : f32 to vector<8x16xf32>
    %55 = arith.select %53, %12, %54 : vector<8x16xi1>, vector<8x16xf32>
    %cst_18 = arith.constant dense<0xFF800000> : vector<8xf32>
    %56 = vector.multi_reduction <maximumf>, %55, %cst_18 [1] : vector<8x16xf32> to vector<8xf32>
    %57 = vector.shape_cast %56 : vector<8xf32> to vector<8x1xf32>
    %58 = arith.extui %51 : vector<1x16xi1> to vector<1x16xi32>
    %59 = arith.sitofp %58 : vector<1x16xi32> to vector<1x16xf32>
    %60 = vector.broadcast %59 : vector<1x16xf32> to vector<8x16xf32>
    %61 = vector.broadcast %57 : vector<8x1xf32> to vector<8x16xf32>
    %62 = arith.mulf %60, %61 : vector<8x16xf32>
    %63 = arith.addf %46, %62 : vector<8x16xf32>
    %c10_i32_19 = arith.constant 10 : i32
    %64 = vector.broadcast %c10_i32_19 : i32 to vector<1x16xi32>
    %65 = arith.cmpi sge, %13, %64 : vector<1x16xi32>
    %c12_i32 = arith.constant 12 : i32
    %66 = vector.broadcast %c12_i32 : i32 to vector<1x16xi32>
    %67 = arith.cmpi slt, %13, %66 : vector<1x16xi32>
    %68 = arith.andi %65, %67 : vector<1x16xi1>
    %cst_20 = arith.constant 0xFF800000 : f32
    %69 = vector.shape_cast %68 : vector<1x16xi1> to vector<1x16xi1>
    %70 = vector.broadcast %69 : vector<1x16xi1> to vector<8x16xi1>
    %71 = vector.broadcast %cst_20 : f32 to vector<8x16xf32>
    %72 = arith.select %70, %12, %71 : vector<8x16xi1>, vector<8x16xf32>
    %cst_21 = arith.constant dense<0xFF800000> : vector<8xf32>
    %73 = vector.multi_reduction <maximumf>, %72, %cst_21 [1] : vector<8x16xf32> to vector<8xf32>
    %74 = vector.shape_cast %73 : vector<8xf32> to vector<8x1xf32>
    %75 = arith.extui %68 : vector<1x16xi1> to vector<1x16xi32>
    %76 = arith.sitofp %75 : vector<1x16xi32> to vector<1x16xf32>
    %77 = vector.broadcast %76 : vector<1x16xf32> to vector<8x16xf32>
    %78 = vector.broadcast %74 : vector<8x1xf32> to vector<8x16xf32>
    %79 = arith.mulf %77, %78 : vector<8x16xf32>
    %80 = arith.addf %63, %79 : vector<8x16xf32>
    %81 = arith.subf %12, %80 : vector<8x16xf32>
    %82 = math.exp %81 : vector<8x16xf32>
    %c0_22 = arith.constant 0 : index
    %c0_23 = arith.constant 0 : index
    %83 = vector.load %arg6[%c0_22, %c0_23] : memref<16x16xf32, #tpu.memory_space<vmem>>, vector<16x16xf32>
    %cst_24 = arith.constant dense<0.000000e+00> : vector<8x16xf32>
    %84 = tpu.matmul %82, %83, %cst_24 {dimension_numbers = #tpu.dot_dimension_numbers<[1], [0], [0], [1], [0, 0, 1, 1], [], []>} : vector<8x16xf32>, vector<16x16xf32>, vector<8x16xf32> -> vector<8x16xf32>
    %85 = tpu.reciprocal %84 {approx = true} : vector<8x16xf32> -> vector<8x16xf32>
    %86 = arith.mulf %84, %85 : vector<8x16xf32>
    %cst_25 = arith.constant 2.000000e+00 : f32
    %87 = vector.broadcast %cst_25 : f32 to vector<8x16xf32>
    %88 = arith.subf %87, %86 : vector<8x16xf32>
    %89 = arith.mulf %85, %88 : vector<8x16xf32>
    %90 = arith.mulf %82, %89 : vector<8x16xf32>
    %c0_26 = arith.constant 0 : index
    %c0_27 = arith.constant 0 : index
    %91 = vector.load %arg7[%c0_26, %c0_27] : memref<8x16xf32, #tpu.memory_space<vmem>>, vector<8x16xf32>
    tpu.vector_store %arg7[%c0_26, %c0_27], %90 {strides = array<i32>} : memref<8x16xf32, #tpu.memory_space<vmem>>, vector<8x16xf32>,
    return
  }
  func.func @transform_0(%arg0: i32) -> (i32, i32) {
    %c0_i32 = arith.constant 0 : i32
    %c0_i32_0 = arith.constant 0 : i32
    return %arg0, %c0_i32 : i32, i32
  }
  func.func @transform_1(%arg0: i32) -> (i32, i32) {
    %c0_i32 = arith.constant 0 : i32
    %c0_i32_0 = arith.constant 0 : i32
    %c0_i32_1 = arith.constant 0 : i32
    return %c0_i32, %c0_i32_0 : i32, i32
  }
  func.func @transform_2(%arg0: i32) -> (i32, i32) {
    %c0_i32 = arith.constant 0 : i32
    %c0_i32_0 = arith.constant 0 : i32
    %c0_i32_1 = arith.constant 0 : i32
    return %c0_i32, %c0_i32_0 : i32, i32
  }
  func.func @transform_3(%arg0: i32) -> (i32, i32) {
    %c0_i32 = arith.constant 0 : i32
    %c0_i32_0 = arith.constant 0 : i32
    %c0_i32_1 = arith.constant 0 : i32
    return %c0_i32, %c0_i32_0 : i32, i32
  }
  func.func @transform_4(%arg0: i32) -> (i32, i32) {
    %c0_i32 = arith.constant 0 : i32
    %c0_i32_0 = arith.constant 0 : i32
    %c0_i32_1 = arith.constant 0 : i32
    return %c0_i32, %c0_i32_0 : i32, i32
  }
  func.func @transform_5(%arg0: i32) -> (i32, i32) {
    %c0_i32 = arith.constant 0 : i32
    %c0_i32_0 = arith.constant 0 : i32
    %c0_i32_1 = arith.constant 0 : i32
    return %c0_i32, %c0_i32_0 : i32, i32
  }
  func.func @transform_6(%arg0: i32) -> (i32, i32) {
    %c0_i32 = arith.constant 0 : i32
    %c0_i32_0 = arith.constant 0 : i32
    return %arg0, %c0_i32 : i32, i32
  }
}

</mosaic_0001>

<llo_original>
// kernel: tpu_custom_call.1
$region0: #{tpu_custom_call.1}
  #allocation0 [shape = 'u32[]', space=smem, size = 0x4, offset = 0x4, fixed_abs, tag = 'smem constant byte address 0x4 - core index']
  #allocation1 [shape = 'u32[144,128]{1,0:T(1,128)}', space=vmem, size = 0x12000, scoped, tag = 'internal scratch']
  %s0 = inlined_call_operand.vmem [shape: f32[8,768], index: 0, kind: input, shape index: {}]
  %s1 = inlined_call_operand.vmem [shape: f32[768,32], index: 1, kind: input, shape index: {}]
  %s2 = inlined_call_operand.vmem [shape: f32[1,32], index: 2, kind: input, shape index: {}]
  %s3 = inlined_call_operand.vmem [shape: f32[32,16], index: 3, kind: input, shape index: {}]
  %s4 = inlined_call_operand.vmem [shape: f32[1,16], index: 4, kind: input, shape index: {}]
  %s5 = inlined_call_operand.vmem [shape: f32[16,16], index: 5, kind: input, shape index: {}]
  %s6 = inlined_call_operand.hbm [shape: f32[8,16], index: 6, kind: output, shape index: {}]
  %s7 = sld [smem:[#allocation0]]
  $region34: #{tpu_custom_call.1} parent=0
    _
  %s9 = ssub.s32 1, %s7
  %s10 = scalar_select 0, %s9, %s7
  $region1: #{tpu_custom_call.1} parent=0
    #allocation2 [shape = 'u8[4096]{0}', space=vmem, size = 0x1000, scoped, tag = 'output window, operand 0, single buffered']
    #allocation3 [shape = 's32[1]{0}', space=sflag, size = 0x4, scoped, tag = 'scoped memory for tpu_custom_call.1']
    %11 = vsyncpa [#allocation3], 0
    // Predicated region
    $region2: #{tpu_custom_call.1} parent=1 // pred_check
      _
    $region3: #{tpu_custom_call.1} parent=1 // pred_check_branch
      %13 = sbr.rel (0) target = $region5
    $region4: #{tpu_custom_call.1} parent=1 // pred_region
      _
    $region5: #{tpu_custom_call.1} parent=1 // pred_fallthru
      _
    // Predicated region
    $region6: #{tpu_custom_call.1} parent=1 // pred_check
      _
    $region7: #{tpu_custom_call.1} parent=1 // pred_check_branch
      %15 = sbr.rel (0) target = $region9
    $region8: #{tpu_custom_call.1} parent=1 // pred_region
      _
    $region9: #{tpu_custom_call.1} parent=1 // pred_fallthru
      _
    // Predicated region
    $region10: #{tpu_custom_call.1} parent=1 // pred_check
      _
    $region11: #{tpu_custom_call.1} parent=1 // pred_check_branch
      %17 = sbr.rel (0) target = $region13
    $region12: #{tpu_custom_call.1} parent=1 // pred_region
      _
    $region13: #{tpu_custom_call.1} parent=1 // pred_fallthru
      _
    // Predicated region
    $region14: #{tpu_custom_call.1} parent=1 // pred_check
      _
    $region15: #{tpu_custom_call.1} parent=1 // pred_check_branch
      %19 = sbr.rel (0) target = $region17
    $region16: #{tpu_custom_call.1} parent=1 // pred_region
      _
    $region17: #{tpu_custom_call.1} parent=1 // pred_fallthru
      _
    // Predicated region
    $region18: #{tpu_custom_call.1} parent=1 // pred_check
      _
    $region19: #{tpu_custom_call.1} parent=1 // pred_check_branch
      %21 = sbr.rel (0) target = $region21
    $region20: #{tpu_custom_call.1} parent=1 // pred_region
      _
    $region21: #{tpu_custom_call.1} parent=1 // pred_fallthru
      _
    // Predicated region
    $region22: #{tpu_custom_call.1} parent=1 // pred_check
      _
    $region23: #{tpu_custom_call.1} parent=1 // pred_check_branch
      %23 = sbr.rel (0) target = $region25
    $region24: #{tpu_custom_call.1} parent=1 // pred_region
      _
    $region25: #{tpu_custom_call.1} parent=1 // pred_fallthru
      _
    %v24 = vld [vmem:[%s0] sm:$0xff]
    %v25 = vld [vmem:[%s0 + $0x8] sm:$0xff]
    %v26 = vld [vmem:[%s0 + $0x10] sm:$0xff]
    %v27 = vld [vmem:[%s0 + $0x18] sm:$0xff]
    %v28 = vld [vmem:[%s0 + $0x20] sm:$0xff]
    %v29 = vld [vmem:[%s0 + $0x28] sm:$0xff]
    %v30 = vld [vmem:[%s1] sm:$0xff]
    %v31 = vld [vmem:[%s1 + $0x8] sm:$0xff]
    %v32 = vld [vmem:[%s1 + $0x10] sm:$0xff]
    %v33 = vld [vmem:[%s1 + $0x18] sm:$0xff]
    %v34 = vld [vmem:[%s1 + $0x20] sm:$0xff]
    %v35 = vld [vmem:[%s1 + $0x28] sm:$0xff]
    %v36 = vld [vmem:[%s1 + $0x30] sm:$0xff]
    %v37 = vld [vmem:[%s1 + $0x38] sm:$0xff]
    %v38 = vld [vmem:[%s1 + $0x40] sm:$0xff]
    %v39 = vld [vmem:[%s1 + $0x48] sm:$0xff]
    %v40 = vld [vmem:[%s1 + $0x50] sm:$0xff]
    %v41 = vld [vmem:[%s1 + $0x58] sm:$0xff]
    %v42 = vld [vmem:[%s1 + $0x60] sm:$0xff]
    %v43 = vld [vmem:[%s1 + $0x68] sm:$0xff]
    %v44 = vld [vmem:[%s1 + $0x70] sm:$0xff]
    %v45 = vld [vmem:[%s1 + $0x78] sm:$0xff]
    %v46 = vld [vmem:[%s1 + $0x80] sm:$0xff]
    %v47 = vld [vmem:[%s1 + $0x88] sm:$0xff]
    %v48 = vld [vmem:[%s1 + $0x90] sm:$0xff]
    %v49 = vld [vmem:[%s1 + $0x98] sm:$0xff]
    %v50 = vld [vmem:[%s1 + $0xa0] sm:$0xff]
    %v51 = vld [vmem:[%s1 + $0xa8] sm:$0xff]
    %v52 = vld [vmem:[%s1 + $0xb0] sm:$0xff]
    %v53 = vld [vmem:[%s1 + $0xb8] sm:$0xff]
    %v54 = vld [vmem:[%s1 + $0xc0] sm:$0xff]
    %v55 = vld [vmem:[%s1 + $0xc8] sm:$0xff]
    %v56 = vld [vmem:[%s1 + $0xd0] sm:$0xff]
    %v57 = vld [vmem:[%s1 + $0xd8] sm:$0xff]
    %v58 = vld [vmem:[%s1 + $0xe0] sm:$0xff]
    %v59 = vld [vmem:[%s1 + $0xe8] sm:$0xff]
    %v60 = vld [vmem:[%s1 + $0xf0] sm:$0xff]
    %v61 = vld [vmem:[%s1 + $0xf8] sm:$0xff]
    %v62 = vld [vmem:[%s1 + $0x100] sm:$0xff]
    %v63 = vld [vmem:[%s1 + $0x108] sm:$0xff]
    %v64 = vld [vmem:[%s1 + $0x110] sm:$0xff]
    %v65 = vld [vmem:[%s1 + $0x118] sm:$0xff]
    %v66 = vld [vmem:[%s1 + $0x120] sm:$0xff]
    %v67 = vld [vmem:[%s1 + $0x128] sm:$0xff]
    %v68 = vld [vmem:[%s1 + $0x130] sm:$0xff]
    %v69 = vld [vmem:[%s1 + $0x138] sm:$0xff]
    %v70 = vld [vmem:[%s1 + $0x140] sm:$0xff]
    %v71 = vld [vmem:[%s1 + $0x148] sm:$0xff]
    %v72 = vld [vmem:[%s1 + $0x150] sm:$0xff]
    %v73 = vld [vmem:[%s1 + $0x158] sm:$0xff]
    %v74 = vld [vmem:[%s1 + $0x160] sm:$0xff]
    %v75 = vld [vmem:[%s1 + $0x168] sm:$0xff]
    %v76 = vld [vmem:[%s1 + $0x170] sm:$0xff]
    %v77 = vld [vmem:[%s1 + $0x178] sm:$0xff]
    %v78 = vld [vmem:[%s1 + $0x180] sm:$0xff]
    %v79 = vld [vmem:[%s1 + $0x188] sm:$0xff]
    %v80 = vld [vmem:[%s1 + $0x190] sm:$0xff]
    %v81 = vld [vmem:[%s1 + $0x198] sm:$0xff]
    %v82 = vld [vmem:[%s1 + $0x1a0] sm:$0xff]
    %v83 = vld [vmem:[%s1 + $0x1a8] sm:$0xff]
    %v84 = vld [vmem:[%s1 + $0x1b0] sm:$0xff]
    %v85 = vld [vmem:[%s1 + $0x1b8] sm:$0xff]
    %v86 = vld [vmem:[%s1 + $0x1c0] sm:$0xff]
    %v87 = vld [vmem:[%s1 + $0x1c8] sm:$0xff]
    %v88 = vld [vmem:[%s1 + $0x1d0] sm:$0xff]
    %v89 = vld [vmem:[%s1 + $0x1d8] sm:$0xff]
    %v90 = vld [vmem:[%s1 + $0x1e0] sm:$0xff]
    %v91 = vld [vmem:[%s1 + $0x1e8] sm:$0xff]
    %v92 = vld [vmem:[%s1 + $0x1f0] sm:$0xff]
    %v93 = vld [vmem:[%s1 + $0x1f8] sm:$0xff]
    %v94 = vld [vmem:[%s1 + $0x200] sm:$0xff]
    %v95 = vld [vmem:[%s1 + $0x208] sm:$0xff]
    %v96 = vld [vmem:[%s1 + $0x210] sm:$0xff]
    %v97 = vld [vmem:[%s1 + $0x218] sm:$0xff]
    %v98 = vld [vmem:[%s1 + $0x220] sm:$0xff]
    %v99 = vld [vmem:[%s1 + $0x228] sm:$0xff]
    %v100 = vld [vmem:[%s1 + $0x230] sm:$0xff]
    %v101 = vld [vmem:[%s1 + $0x238] sm:$0xff]
    %v102 = vld [vmem:[%s1 + $0x240] sm:$0xff]
    %v103 = vld [vmem:[%s1 + $0x248] sm:$0xff]
    %v104 = vld [vmem:[%s1 + $0x250] sm:$0xff]
    %v105 = vld [vmem:[%s1 + $0x258] sm:$0xff]
    %v106 = vld [vmem:[%s1 + $0x260] sm:$0xff]
    %v107 = vld [vmem:[%s1 + $0x268] sm:$0xff]
    %v108 = vld [vmem:[%s1 + $0x270] sm:$0xff]
    %v109 = vld [vmem:[%s1 + $0x278] sm:$0xff]
    %v110 = vld [vmem:[%s1 + $0x280] sm:$0xff]
    %v111 = vld [vmem:[%s1 + $0x288] sm:$0xff]
    %v112 = vld [vmem:[%s1 + $0x290] sm:$0xff]
    %v113 = vld [vmem:[%s1 + $0x298] sm:$0xff]
    %v114 = vld [vmem:[%s1 + $0x2a0] sm:$0xff]
    %v115 = vld [vmem:[%s1 + $0x2a8] sm:$0xff]
    %v116 = vld [vmem:[%s1 + $0x2b0] sm:$0xff]
    %v117 = vld [vmem:[%s1 + $0x2b8] sm:$0xff]
    %v118 = vld [vmem:[%s1 + $0x2c0] sm:$0xff]
    %v119 = vld [vmem:[%s1 + $0x2c8] sm:$0xff]
    %v120 = vld [vmem:[%s1 + $0x2d0] sm:$0xff]
    %v121 = vld [vmem:[%s1 + $0x2d8] sm:$0xff]
    %v122 = vld [vmem:[%s1 + $0x2e0] sm:$0xff]
    %v123 = vld [vmem:[%s1 + $0x2e8] sm:$0xff]
    %v124 = vld [vmem:[%s1 + $0x2f0] sm:$0xff]
    %v125 = vld [vmem:[%s1 + $0x2f8] sm:$0xff]
    %v126 = vld [vmem:[%s2] sm:$0x1]
    %v128 = vlaneseq
    %v129 = vshrl.u32 %v128, 7
    %v130 = vsub.s32 0, %v129
    %v131 = vrot.slane %v126, %v130
    %133 = vmatprep.subr.mxu0 0.0
    %134 = vmatpush1.msra.mxu0 %v30
    %135 = vmatprep.subr.mxu0 0.0
    %136 = vmatpush1.msra.mxu0 %v31
    %137 = vmatprep.subr.mxu0 0.0
    %138 = vmatpush1.msra.mxu0 %v32
    %139 = vmatprep.subr.mxu0 0.0
    %140 = vmatpush1.msra.mxu0 %v33
    %141 = vmatprep.subr.mxu0 0.0
    %142 = vmatpush1.msra.mxu0 %v34
    %143 = vmatprep.subr.mxu0 0.0
    %144 = vmatpush1.msra.mxu0 %v35
    %145 = vmatprep.subr.mxu0 0.0
    %146 = vmatpush1.msra.mxu0 %v36
    %147 = vmatprep.subr.mxu0 0.0
    %148 = vmatpush1.msra.mxu0 %v37
    %149 = vmatprep.subr.mxu0 0.0
    %150 = vmatpush1.msra.mxu0 %v38
    %151 = vmatprep.subr.mxu0 0.0
    %152 = vmatpush1.msra.mxu0 %v39
    %153 = vmatprep.subr.mxu0 0.0
    %154 = vmatpush1.msra.mxu0 %v40
    %155 = vmatprep.subr.mxu0 0.0
    %156 = vmatpush1.msra.mxu0 %v41
    %157 = vmatprep.subr.mxu0 0.0
    %158 = vmatpush1.msra.mxu0 %v42
    %159 = vmatprep.subr.mxu0 0.0
    %160 = vmatpush1.msra.mxu0 %v43
    %161 = vmatprep.subr.mxu0 0.0
    %162 = vmatpush1.msra.mxu0 %v44
    %163 = vmatprep.subr.mxu0 0.0
    %164 = vmatpush1.msra.mxu0 %v45
    %165 = vmatprep.subr.mxu0 0.0
    %166 = vmatpush1.msra.mxu0 %v46
    %167 = vmatprep.subr.mxu0 0.0
    %168 = vmatpush1.msra.mxu0 %v47
    %169 = vmatprep.subr.mxu0 0.0
    %170 = vmatpush1.msra.mxu0 %v48
    %171 = vmatprep.subr.mxu0 0.0
    %172 = vmatpush1.msra.mxu0 %v49
    %173 = vmatprep.subr.mxu0 0.0
    %174 = vmatpush1.msra.mxu0 %v50
    %175 = vmatprep.subr.mxu0 0.0
    %176 = vmatpush1.msra.mxu0 %v51
    %177 = vmatprep.subr.mxu0 0.0
    %178 = vmatpush1.msra.mxu0 %v52
    %179 = vmatprep.subr.mxu0 0.0
    %180 = vmatpush1.msra.mxu0 %v53
    %181 = vmatprep.subr.mxu0 0.0
    %182 = vmatpush1.msra.mxu0 %v54
    %183 = vmatprep.subr.mxu0 0.0
    %184 = vmatpush1.msra.mxu0 %v55
    %185 = vmatprep.subr.mxu0 0.0
    %186 = vmatpush1.msra.mxu0 %v56
    %187 = vmatprep.subr.mxu0 0.0
    %188 = vmatpush1.msra.mxu0 %v57
    %189 = vmatprep.subr.mxu0 0.0
    %190 = vmatpush1.msra.mxu0 %v58
    %191 = vmatprep.subr.mxu0 0.0
    %192 = vmatpush1.msra.mxu0 %v59
    %193 = vmatprep.subr.mxu0 0.0
    %194 = vmatpush1.msra.mxu0 %v60
    %195 = vmatprep.subr.mxu0 0.0
    %196 = vmatpush1.msra.mxu0 %v61
    %197 = vmatprep.mubr.f32.mxu0 %v25
    %198 = vmatmul.mubr.f32.gmra.mrb[0].mxu0 %v24
    %v199 = vpop.f32.mrb[0].mxu0
    %v200 = vadd.f32 %v131, %v199
    %v201 = vpop.f32.mrb[0].mxu0
    %202 = vdwg.mxu0
    %203 = vmatprep.subr.mxu0 0.0
    %204 = vmatpush1.msra.mxu0 %v62
    %205 = vmatprep.subr.mxu0 0.0
    %206 = vmatpush1.msra.mxu0 %v63
    %207 = vmatprep.subr.mxu0 0.0
    %208 = vmatpush1.msra.mxu0 %v64
    %209 = vmatprep.subr.mxu0 0.0
    %210 = vmatpush1.msra.mxu0 %v65
    %211 = vmatprep.subr.mxu0 0.0
    %212 = vmatpush1.msra.mxu0 %v66
    %213 = vmatprep.subr.mxu0 0.0
    %214 = vmatpush1.msra.mxu0 %v67
    %215 = vmatprep.subr.mxu0 0.0
    %216 = vmatpush1.msra.mxu0 %v68
    %217 = vmatprep.subr.mxu0 0.0
    %218 = vmatpush1.msra.mxu0 %v69
    %219 = vmatprep.subr.mxu0 0.0
    %220 = vmatpush1.msra.mxu0 %v70
    %221 = vmatprep.subr.mxu0 0.0
    %222 = vmatpush1.msra.mxu0 %v71
    %223 = vmatprep.subr.mxu0 0.0
    %224 = vmatpush1.msra.mxu0 %v72
    %225 = vmatprep.subr.mxu0 0.0
    %226 = vmatpush1.msra.mxu0 %v73
    %227 = vmatprep.subr.mxu0 0.0
    %228 = vmatpush1.msra.mxu0 %v74
    %229 = vmatprep.subr.mxu0 0.0
    %230 = vmatpush1.msra.mxu0 %v75
    %231 = vmatprep.subr.mxu0 0.0
    %232 = vmatpush1.msra.mxu0 %v76
    %233 = vmatprep.subr.mxu0 0.0
    %234 = vmatpush1.msra.mxu0 %v77
    %235 = vmatprep.subr.mxu0 0.0
    %236 = vmatpush1.msra.mxu0 %v78
    %237 = vmatprep.subr.mxu0 0.0
    %238 = vmatpush1.msra.mxu0 %v79
    %239 = vmatprep.subr.mxu0 0.0
    %240 = vmatpush1.msra.mxu0 %v80
    %241 = vmatprep.subr.mxu0 0.0
    %242 = vmatpush1.msra.mxu0 %v81
    %243 = vmatprep.subr.mxu0 0.0
    %244 = vmatpush1.msra.mxu0 %v82
    %245 = vmatprep.subr.mxu0 0.0
    %246 = vmatpush1.msra.mxu0 %v83
    %247 = vmatprep.subr.mxu0 0.0
    %248 = vmatpush1.msra.mxu0 %v84
    %249 = vmatprep.subr.mxu0 0.0
    %250 = vmatpush1.msra.mxu0 %v85
    %251 = vmatprep.subr.mxu0 0.0
    %252 = vmatpush1.msra.mxu0 %v86
    %253 = vmatprep.subr.mxu0 0.0
    %254 = vmatpush1.msra.mxu0 %v87
    %255 = vmatprep.subr.mxu0 0.0
    %256 = vmatpush1.msra.mxu0 %v88
    %257 = vmatprep.subr.mxu0 0.0
    %258 = vmatpush1.msra.mxu0 %v89
    %259 = vmatprep.subr.mxu0 0.0
    %260 = vmatpush1.msra.mxu0 %v90
    %261 = vmatprep.subr.mxu0 0.0
    %262 = vmatpush1.msra.mxu0 %v91
    %263 = vmatprep.subr.mxu0 0.0
    %264 = vmatpush1.msra.mxu0 %v92
    %265 = vmatprep.subr.mxu0 0.0
    %266 = vmatpush1.msra.mxu0 %v93
    %267 = vmatprep.mubr.f32.mxu0 %v27
    %268 = vmatmul.mubr.f32.gmra.mrb[0].mxu0 %v26
    %v269 = vpop.f32.mrb[0].mxu0
    %v270 = vadd.f32 %v200, %v269
    %v271 = vpop.f32.mrb[0].mxu0
    %272 = vdwg.mxu0
    %273 = vmatprep.subr.mxu0 0.0
    %274 = vmatpush1.msra.mxu0 %v94
    %275 = vmatprep.subr.mxu0 0.0
    %276 = vmatpush1.msra.mxu0 %v95
    %277 = vmatprep.subr.mxu0 0.0
    %278 = vmatpush1.msra.mxu0 %v96
    %279 = vmatprep.subr.mxu0 0.0
    %280 = vmatpush1.msra.mxu0 %v97
    %281 = vmatprep.subr.mxu0 0.0
    %282 = vmatpush1.msra.mxu0 %v98
    %283 = vmatprep.subr.mxu0 0.0
    %284 = vmatpush1.msra.mxu0 %v99
    %285 = vmatprep.subr.mxu0 0.0
    %286 = vmatpush1.msra.mxu0 %v100
    %287 = vmatprep.subr.mxu0 0.0
    %288 = vmatpush1.msra.mxu0 %v101
    %289 = vmatprep.subr.mxu0 0.0
    %290 = vmatpush1.msra.mxu0 %v102
    %291 = vmatprep.subr.mxu0 0.0
    %292 = vmatpush1.msra.mxu0 %v103
    %293 = vmatprep.subr.mxu0 0.0
    %294 = vmatpush1.msra.mxu0 %v104
    %295 = vmatprep.subr.mxu0 0.0
    %296 = vmatpush1.msra.mxu0 %v105
    %297 = vmatprep.subr.mxu0 0.0
    %298 = vmatpush1.msra.mxu0 %v106
    %299 = vmatprep.subr.mxu0 0.0
    %300 = vmatpush1.msra.mxu0 %v107
    %301 = vmatprep.subr.mxu0 0.0
    %302 = vmatpush1.msra.mxu0 %v108
    %303 = vmatprep.subr.mxu0 0.0
    %304 = vmatpush1.msra.mxu0 %v109
    %305 = vmatprep.subr.mxu0 0.0
    %306 = vmatpush1.msra.mxu0 %v110
    %307 = vmatprep.subr.mxu0 0.0
    %308 = vmatpush1.msra.mxu0 %v111
    %309 = vmatprep.subr.mxu0 0.0
    %310 = vmatpush1.msra.mxu0 %v112
    %311 = vmatprep.subr.mxu0 0.0
    %312 = vmatpush1.msra.mxu0 %v113
    %313 = vmatprep.subr.mxu0 0.0
    %314 = vmatpush1.msra.mxu0 %v114
    %315 = vmatprep.subr.mxu0 0.0
    %316 = vmatpush1.msra.mxu0 %v115
    %317 = vmatprep.subr.mxu0 0.0
    %318 = vmatpush1.msra.mxu0 %v116
    %319 = vmatprep.subr.mxu0 0.0
    %320 = vmatpush1.msra.mxu0 %v117
    %321 = vmatprep.subr.mxu0 0.0
    %322 = vmatpush1.msra.mxu0 %v118
    %323 = vmatprep.subr.mxu0 0.0
    %324 = vmatpush1.msra.mxu0 %v119
    %325 = vmatprep.subr.mxu0 0.0
    %326 = vmatpush1.msra.mxu0 %v120
    %327 = vmatprep.subr.mxu0 0.0
    %328 = vmatpush1.msra.mxu0 %v121
    %329 = vmatprep.subr.mxu0 0.0
    %330 = vmatpush1.msra.mxu0 %v122
    %331 = vmatprep.subr.mxu0 0.0
    %332 = vmatpush1.msra.mxu0 %v123
    %333 = vmatprep.subr.mxu0 0.0
    %334 = vmatpush1.msra.mxu0 %v124
    %335 = vmatprep.subr.mxu0 0.0
    %336 = vmatpush1.msra.mxu0 %v125
    %337 = vmatprep.mubr.f32.mxu0 %v29
    %338 = vmatmul.mubr.f32.gmra.mrb[0].mxu0 %v28
    %v339 = vpop.f32.mrb[0].mxu0
    %v340 = vadd.f32 %v270, %v339
    %v341 = vpop.f32.mrb[0].mxu0
    %342 = vdwg.mxu0
    %v343 = vmax.f32 %v340, 0.0
    %v344 = vld [vmem:[%s3] sm:$0xff]
    %v345 = vld [vmem:[%s3 + $0x8] sm:$0xff]
    %v346 = vld [vmem:[%s3 + $0x10] sm:$0xff]
    %v347 = vld [vmem:[%s3 + $0x18] sm:$0xff]
    %v348 = vld [vmem:[%s4] sm:$0x1]
    %v350 = vlaneseq
    %v351 = vshrl.u32 %v350, 7
    %v352 = vsub.s32 0, %v351
    %v353 = vrot.slane %v348, %v352
    %vm355 = vcmask 261120
    %v357 = vsel %vm355, %v343, 0
    %359 = vmatprep.subr.mxu0 0.0
    %360 = vmatpush1.msra.mxu0 %v344
    %361 = vmatprep.subr.mxu0 0.0
    %362 = vmatpush1.msra.mxu0 %v345
    %363 = vmatprep.subr.mxu0 0.0
    %364 = vmatpush1.msra.mxu0 %v346
    %365 = vmatprep.subr.mxu0 0.0
    %366 = vmatpush1.msra.mxu0 %v347
    %367 = vmatprep.subr.mxu0 0.0
    %368 = vmatpush1.msra.mxu0 0.0
    %369 = vmatprep.subr.mxu0 0.0
    %370 = vmatpush1.msra.mxu0 0.0
    %371 = vmatprep.subr.mxu0 0.0
    %372 = vmatpush1.msra.mxu0 0.0
    %373 = vmatprep.subr.mxu0 0.0
    %374 = vmatpush1.msra.mxu0 0.0
    %375 = vmatprep.subr.mxu0 0.0
    %376 = vmatpush1.msra.mxu0 0.0
    %377 = vmatprep.subr.mxu0 0.0
    %378 = vmatpush1.msra.mxu0 0.0
    %379 = vmatprep.subr.mxu0 0.0
    %380 = vmatpush1.msra.mxu0 0.0
    %381 = vmatprep.subr.mxu0 0.0
    %382 = vmatpush1.msra.mxu0 0.0
    %383 = vmatprep.subr.mxu0 0.0
    %384 = vmatpush1.msra.mxu0 0.0
    %385 = vmatprep.subr.mxu0 0.0
    %386 = vmatpush1.msra.mxu0 0.0
    %387 = vmatprep.subr.mxu0 0.0
    %388 = vmatpush1.msra.mxu0 0.0
    %389 = vmatprep.subr.mxu0 0.0
    %390 = vmatpush1.msra.mxu0 0.0
    %391 = vmatprep.subr.mxu0 0.0
    %392 = vmatpush1.msra.mxu0 0.0
    %393 = vmatprep.subr.mxu0 0.0
    %394 = vmatpush1.msra.mxu0 0.0
    %395 = vmatprep.subr.mxu0 0.0
    %396 = vmatpush1.msra.mxu0 0.0
    %397 = vmatprep.subr.mxu0 0.0
    %398 = vmatpush1.msra.mxu0 0.0
    %399 = vmatprep.subr.mxu0 0.0
    %400 = vmatpush1.msra.mxu0 0.0
    %401 = vmatprep.subr.mxu0 0.0
    %402 = vmatpush1.msra.mxu0 0.0
    %403 = vmatprep.subr.mxu0 0.0
    %404 = vmatpush1.msra.mxu0 0.0
    %405 = vmatprep.subr.mxu0 0.0
    %406 = vmatpush1.msra.mxu0 0.0
    %407 = vmatprep.subr.mxu0 0.0
    %408 = vmatpush1.msra.mxu0 0.0
    %409 = vmatprep.subr.mxu0 0.0
    %410 = vmatpush1.msra.mxu0 0.0
    %411 = vmatprep.subr.mxu0 0.0
    %412 = vmatpush1.msra.mxu0 0.0
    %413 = vmatprep.subr.mxu0 0.0
    %414 = vmatpush1.msra.mxu0 0.0
    %415 = vmatprep.subr.mxu0 0.0
    %416 = vmatpush1.msra.mxu0 0.0
    %417 = vmatprep.subr.mxu0 0.0
    %418 = vmatpush1.msra.mxu0 0.0
    %419 = vmatprep.subr.mxu0 0.0
    %420 = vmatpush1.msra.mxu0 0.0
    %421 = vmatprep.subr.mxu0 0.0
    %422 = vmatpush1.msra.mxu0 0.0
    %423 = vmatprep.mubr.f32.mxu0 0.0
    %424 = vmatmul.mubr.f32.gmra.mrb[0].mxu0 %v357
    %v425 = vpop.f32.mrb[0].mxu0
    %v426 = vadd.f32 %v353, %v425
    %v427 = vpop.f32.mrb[0].mxu0
    %428 = vdwg.mxu0
    %v429 = vlaneseq
    %v430 = vand.u32 %v429, 127
    %vm431 = vcmp.ge.s32.totalorder %v430, 0
    %vm432 = vcmp.lt.s32.totalorder %v430, 4
    %vm433 = vmand %vm431, %vm432
    %v434 = vsel %vm433, 1, 0
    %vm435 = vcmp.eq.s32.totalorder %v434, 1
    %v436 = vsel %vm435, %v426, -inf
    %vm437 = vcmask 130048
    %v438 = vsel %vm437, %v436, -inf
    %439 = vmax.xlane.f32.xlu0 %v438
    %v440 = vpop.xlane.xlu0 %439
    %v441 = vcvt.s32.f32 %v434
    %v442 = vmul.f32 %v441, %v440
    %vm443 = vcmp.ge.s32.totalorder %v430, 4
    %vm444 = vcmp.lt.s32.totalorder %v430, 7
    %vm445 = vmand %vm443, %vm444
    %v446 = vsel %vm445, 1, 0
    %vm447 = vcmp.eq.s32.totalorder %v446, 1
    %v448 = vsel %vm447, %v426, -inf
    %v449 = vsel %vm437, %v448, -inf
    %450 = vmax.xlane.f32.xlu0 %v449
    %v451 = vpop.xlane.xlu0 %450
    %v452 = vcvt.s32.f32 %v446
    %v453 = vmul.f32 %v452, %v451
    %v454 = vadd.f32 %v442, %v453
    %vm455 = vcmp.ge.s32.totalorder %v430, 7
    %vm456 = vcmp.lt.s32.totalorder %v430, 10
    %vm457 = vmand %vm455, %vm456
    %v458 = vsel %vm457, 1, 0
    %vm459 = vcmp.eq.s32.totalorder %v458, 1
    %v460 = vsel %vm459, %v426, -inf
    %v461 = vsel %vm437, %v460, -inf
    %462 = vmax.xlane.f32.xlu0 %v461
    %v463 = vpop.xlane.xlu0 %462
    %v464 = vcvt.s32.f32 %v458
    %v465 = vmul.f32 %v464, %v463
    %v466 = vadd.f32 %v454, %v465
    %vm467 = vcmp.ge.s32.totalorder %v430, 10
    %vm468 = vcmp.lt.s32.totalorder %v430, 12
    %vm469 = vmand %vm467, %vm468
    %v470 = vsel %vm469, 1, 0
    %vm471 = vcmp.eq.s32.totalorder %v470, 1
    %v472 = vsel %vm471, %v426, -inf
    %v473 = vsel %vm437, %v472, -inf
    %474 = vmax.xlane.f32.xlu0 %v473
    %v475 = vpop.xlane.xlu0 %474
    %v476 = vcvt.s32.f32 %v470
    %v477 = vmul.f32 %v476, %v475
    %v478 = vadd.f32 %v466, %v477
    %v479 = vsub.f32 %v426, %v478
    %v480 = vmul.f32 %v479, 1.442695
    %v481 = vpow.pop %v480
    %v482 = vld [vmem:[%s5] sm:$0xff]
    %v483 = vld [vmem:[%s5 + $0x8] sm:$0xff]
    %v485 = vsel %vm437, %v481, 0
    %487 = vmatprep.subr.mxu0 0.0
    %488 = vmatpush1.msra.mxu0 %v482
    %489 = vmatprep.subr.mxu0 0.0
    %490 = vmatpush1.msra.mxu0 %v483
    %491 = vmatprep.subr.mxu0 0.0
    %492 = vmatpush1.msra.mxu0 0.0
    %493 = vmatprep.subr.mxu0 0.0
    %494 = vmatpush1.msra.mxu0 0.0
    %495 = vmatprep.subr.mxu0 0.0
    %496 = vmatpush1.msra.mxu0 0.0
    %497 = vmatprep.subr.mxu0 0.0
    %498 = vmatpush1.msra.mxu0 0.0
    %499 = vmatprep.subr.mxu0 0.0
    %500 = vmatpush1.msra.mxu0 0.0
    %501 = vmatprep.subr.mxu0 0.0
    %502 = vmatpush1.msra.mxu0 0.0
    %503 = vmatprep.subr.mxu0 0.0
    %504 = vmatpush1.msra.mxu0 0.0
    %505 = vmatprep.subr.mxu0 0.0
    %506 = vmatpush1.msra.mxu0 0.0
    %507 = vmatprep.subr.mxu0 0.0
    %508 = vmatpush1.msra.mxu0 0.0
    %509 = vmatprep.subr.mxu0 0.0
    %510 = vmatpush1.msra.mxu0 0.0
    %511 = vmatprep.subr.mxu0 0.0
    %512 = vmatpush1.msra.mxu0 0.0
    %513 = vmatprep.subr.mxu0 0.0
    %514 = vmatpush1.msra.mxu0 0.0
    %515 = vmatprep.subr.mxu0 0.0
    %516 = vmatpush1.msra.mxu0 0.0
    %517 = vmatprep.subr.mxu0 0.0
    %518 = vmatpush1.msra.mxu0 0.0
    %519 = vmatprep.subr.mxu0 0.0
    %520 = vmatpush1.msra.mxu0 0.0
    %521 = vmatprep.subr.mxu0 0.0
    %522 = vmatpush1.msra.mxu0 0.0
    %523 = vmatprep.subr.mxu0 0.0
    %524 = vmatpush1.msra.mxu0 0.0
    %525 = vmatprep.subr.mxu0 0.0
    %526 = vmatpush1.msra.mxu0 0.0
    %527 = vmatprep.subr.mxu0 0.0
    %528 = vmatpush1.msra.mxu0 0.0
    %529 = vmatprep.subr.mxu0 0.0
    %530 = vmatpush1.msra.mxu0 0.0
    %531 = vmatprep.subr.mxu0 0.0
    %532 = vmatpush1.msra.mxu0 0.0
    %533 = vmatprep.subr.mxu0 0.0
    %534 = vmatpush1.msra.mxu0 0.0
    %535 = vmatprep.subr.mxu0 0.0
    %536 = vmatpush1.msra.mxu0 0.0
    %537 = vmatprep.subr.mxu0 0.0
    %538 = vmatpush1.msra.mxu0 0.0
    %539 = vmatprep.subr.mxu0 0.0
    %540 = vmatpush1.msra.mxu0 0.0
    %541 = vmatprep.subr.mxu0 0.0
    %542 = vmatpush1.msra.mxu0 0.0
    %543 = vmatprep.subr.mxu0 0.0
    %544 = vmatpush1.msra.mxu0 0.0
    %545 = vmatprep.subr.mxu0 0.0
    %546 = vmatpush1.msra.mxu0 0.0
    %547 = vmatprep.subr.mxu0 0.0
    %548 = vmatpush1.msra.mxu0 0.0
    %549 = vmatprep.subr.mxu0 0.0
    %550 = vmatpush1.msra.mxu0 0.0
    %551 = vmatprep.mubr.f32.mxu0 0.0
    %552 = vmatmul.mubr.f32.gmra.mrb[0].mxu0 %v485
    %v553 = vpop.f32.mrb[0].mxu0
    %v554 = vadd.f32 0.0, %v553
    %v555 = vpop.f32.mrb[0].mxu0
    %556 = vdwg.mxu0
    %v557 = vrcp.pop %v554
    %v558 = vmul.f32 %v554, %v557
    %v559 = vsub.f32 2.0, %v558
    %v560 = vmul.f32 %v557, %v559
    %v561 = vmul.f32 %v481, %v560
    %562 = vst.msk [vmem:[#allocation2] sm:$0xff] %vm437, %v561
    // Predicated region
    $region26: #{tpu_custom_call.1} parent=1 // pred_check
      _
    $region27: #{tpu_custom_call.1} parent=1 // pred_check_branch
      %564 = sbr.rel (0) target = $region29
    $region28: #{tpu_custom_call.1} parent=1 // pred_region
      %s566 = ssub.s32 128, 128
      %567 = vsyncadd [#allocation3], %s566
      %s569 = sshll.u32 [#allocation2], 4
      %s570 = int_to_ptr.vmem [resolvable:$true] %s569
      %572 = dma.vmem_to_hbm [thread:$0]  %s570, 128, %s6, [#allocation3]
    $region29: #{tpu_custom_call.1} parent=1 // pred_fallthru
      _
    // Predicated region
    $region30: #{tpu_custom_call.1} parent=1 // pred_check
      _
    $region31: #{tpu_custom_call.1} parent=1 // pred_check_branch
      %574 = sbr.rel (0) target = $region33
    $region32: #{tpu_custom_call.1} parent=1 // pred_region
      %575 = dma.done [#allocation3], 128
    $region33: #{tpu_custom_call.1} parent=1 // pred_fallthru
      _
    %576 = vsyncpa [#allocation3], 1

</llo_original>
